<compile_context>
chip_gen: v5e
topology: v5e:2x2
jax: 0.10.0
libtpu: 0.0.40
codegen_flags: <defaults>
</compile_context>

<pallas_src>
import functools

import jax
import jax.numpy as jnp
from jax import lax
from jax.experimental import pallas as pl
from jax.experimental.pallas import tpu as pltpu

LANE = 128
SUBLANE = 8
_ACC_BUDGET_BYTES = 128 * 1024     # vreg-resident f32 accumulator budget (~half the vreg file)


def _round_up(x, m):
    return ((x + m - 1) // m) * m


def _sublane_multiple(itemsize):
    # Packed dtypes pack along sublanes: f32 -> 8, bf16 -> 16, int8/fp8 -> 32.
    return max(SUBLANE, 32 // max(1, itemsize))


def _vmem_budgets():
    """(per-input-buffer bytes, vmem_limit_bytes), generation-aware."""
    try:
        cap = pltpu.get_tpu_info().vmem_capacity_bytes
    except Exception:
        cap = 64 * 1024 * 1024                      # conservative (v7x-sized) fallback
    if cap >= 96 * 1024 * 1024:                     # v5e / v6e: 128 MiB physical VMEM
        return 16 * 1024 * 1024, 96 * 1024 * 1024
    return 8 * 1024 * 1024, 48 * 1024 * 1024        # v7x: 64 MiB physical VMEM


def _choose_batch_tile(seq_len, emb_dim, batch, itemsize, per_buffer_bytes, lane_major):
    """Largest batch tile that fits the DMA-buffer and vreg-accumulator budgets."""
    align = LANE if lane_major else _sublane_multiple(itemsize)
    tb = per_buffer_bytes // max(1, seq_len * emb_dim * itemsize)   # (S, *, E) tile budget
    tb = min(tb, _ACC_BUDGET_BYTES // max(1, emb_dim * 4))          # f32 acc stays in vregs
    tb = max(align, (tb // align) * align)
    if (not lane_major) and tb >= LANE:
        tb = (tb // LANE) * LANE                                    # MXU-friendly M when affordable
    if tb >= batch and batch > align:                               # keep >= 2 grid steps (megacore)
        tb = min(tb, _round_up(-(-batch // 2), align))
    return min(tb, _round_up(batch, align))


def _kernel_wide(emb_ref, w_ref, b_ref, o_ref, *, unroll):
    # emb_ref: (S, TB, E)   batch on sublanes, embedding on lanes (E >= 128)
    # w_ref:   (E, O_pad)   fc weight, transposed, pre-scaled by 1/S
    # b_ref:   (1, O_pad)   fc bias (unscaled)
    # o_ref:   (TB, O_pad)
    seq_len, tb, emb_dim = emb_ref.shape

    def add_step(s, acc):
        return acc + emb_ref[s].astype(jnp.float32)    # full-tile VPU add per token

    summed = lax.fori_loop(0, seq_len, add_step,
                           jnp.zeros((tb, emb_dim), jnp.float32), unroll=unroll)
    out = jnp.dot(summed, w_ref[...], preferred_element_type=jnp.float32)   # (TB, O_pad)
    o_ref[...] = (out + b_ref[...]).astype(o_ref.dtype)


def _kernel_narrow(emb_ref, w_ref, b_ref, o_ref, *, unroll):
    # emb_ref: (S, E, TB)   embedding on sublanes, batch on lanes (E < 128)
    # w_ref:   (O_pad, E)   fc weight, pre-scaled by 1/S
    # b_ref:   (O_pad, 1)
    # o_ref:   (O_pad, TB)  = fc(pooled)^T, lane-dense
    seq_len, emb_dim, tb = emb_ref.shape

    def add_step(s, acc):
        return acc + emb_ref[s].astype(jnp.float32)

    summed = lax.fori_loop(0, seq_len, add_step,
                           jnp.zeros((emb_dim, tb), jnp.float32), unroll=unroll)
    out = jnp.dot(w_ref[...], summed, preferred_element_type=jnp.float32)   # (O_pad, TB)
    o_ref[...] = (out + b_ref[...]).astype(o_ref.dtype)


def fasttext_forward(text, emb_table, fc_weight, fc_bias, *,
                     batch_tile=None, transport_dtype=jnp.bfloat16):
    """FastText forward.  text: (S, B) int; emb_table: (V, E); fc_weight: (O, E);
    fc_bias: (O,).  Returns (B, O) float32.

    transport_dtype: dtype of the embedded activation streamed through HBM
    (default bf16 halves the dominant traffic; accumulation is always f32).
    Use jnp.float32 to match the f32 PyTorch module bit-for-bit.
    """
    S, B = text.shape
    V, E = emb_table.shape
    O = fc_weight.shape[0]

    act_dtype = jnp.dtype(transport_dtype)
    itemsize = act_dtype.itemsize
    per_buffer, vmem_limit = _vmem_budgets()
    lane_major_batch = E < LANE                       # small-E path: batch lives on lanes

    if batch_tile is not None:
        align = LANE if lane_major_batch else _sublane_multiple(itemsize)
        TB = max(align, _round_up(batch_tile, align))
    else:
        TB = _choose_batch_tile(S, E, B, itemsize, per_buffer, lane_major_batch)
    B_pad = _round_up(max(B, TB), TB)
    O_pad = _round_up(O, LANE)

    # Pad the cheap int32 token ids (padded columns use token 0, a valid row, and
    # are sliced off the result below).
    text_p = text if B_pad == B else jnp.pad(text, ((0, 0), (0, B_pad - B)))

    # Cast the (tiny) table once so the gather writes the transport dtype directly.
    table = emb_table.astype(act_dtype)
    unroll = S if S <= 16 else 8
    flops = S * B_pad * E + 2 * B_pad * E * O_pad

    if lane_major_batch:
        # Gather straight into (S, E, B_pad): no HBM transpose of the activation.
        embedded = jax.vmap(lambda ids: jnp.take(table.T, ids, axis=1))(text_p)
        w_p = jnp.zeros((O_pad, E), jnp.float32).at[:O, :].set(
            fc_weight.astype(jnp.float32) * (1.0 / S))
        b_p = jnp.zeros((O_pad, 1), jnp.float32).at[:O, 0].set(
            fc_bias.astype(jnp.float32))
        bytes_accessed = (S * E * B_pad * itemsize + O_pad * E * 4 + O_pad * 4
                          + O_pad * B_pad * 4)
        out_t = pl.pallas_call(
            functools.partial(_kernel_narrow, unroll=unroll),
            out_shape=jax.ShapeDtypeStruct((O_pad, B_pad), jnp.float32),
            grid=(B_pad // TB,),
            in_specs=[
                pl.BlockSpec((S, E, TB), lambda i: (0, 0, i)),
                pl.BlockSpec((O_pad, E), lambda i: (0, 0)),   # resident weight
                pl.BlockSpec((O_pad, 1), lambda i: (0, 0)),   # resident bias
            ],
            out_specs=pl.BlockSpec((O_pad, TB), lambda i: (0, i)),
            compiler_params=pltpu.CompilerParams(
                dimension_semantics=("parallel",),
                vmem_limit_bytes=vmem_limit),
            cost_estimate=pl.CostEstimate(flops=flops, transcendentals=0,
                                          bytes_accessed=bytes_accessed),
        )(embedded, w_p, b_p)
        return out_t[:O, :B].T

    # Wide path (E >= 128): natural (S, B_pad, E) gather, batch tiled on sublanes.
    embedded = jnp.take(table, text_p, axis=0)                       # (S, B_pad, E)
    w_p = jnp.zeros((E, O_pad), jnp.float32).at[:, :O].set(
        fc_weight.T.astype(jnp.float32) * (1.0 / S))
    b_p = jnp.zeros((1, O_pad), jnp.float32).at[0, :O].set(
        fc_bias.astype(jnp.float32))
    bytes_accessed = (S * B_pad * E * itemsize + E * O_pad * 4 + O_pad * 4
                      + B_pad * O_pad * 4)
    out = pl.pallas_call(
        functools.partial(_kernel_wide, unroll=unroll),
        out_shape=jax.ShapeDtypeStruct((B_pad, O_pad), jnp.float32),
        grid=(B_pad // TB,),
        in_specs=[
            pl.BlockSpec((S, TB, E), lambda i: (0, i, 0)),
            pl.BlockSpec((E, O_pad), lambda i: (0, 0)),       # resident weight
            pl.BlockSpec((1, O_pad), lambda i: (0, 0)),       # resident bias
        ],
        out_specs=pl.BlockSpec((TB, O_pad), lambda i: (i, 0)),
        compiler_params=pltpu.CompilerParams(
            dimension_semantics=("parallel",),
            vmem_limit_bytes=vmem_limit),
        cost_estimate=pl.CostEstimate(flops=flops, transcendentals=0,
                                      bytes_accessed=bytes_accessed),
    )(embedded, w_p, b_p)
    return out[:B, :O]


def init_params(key, vocab_size, embedding_dim, output_dim, pad_idx):
    k1, k2, k3 = jax.random.split(key, 3)
    emb_table = jax.random.normal(k1, (vocab_size, embedding_dim), jnp.float32)
    emb_table = emb_table.at[pad_idx].set(0.0)      # nn.Embedding(padding_idx=...)
    bound = 1.0 / (embedding_dim ** 0.5)            # nn.Linear default init
    fc_weight = jax.random.uniform(k2, (output_dim, embedding_dim),
                                   jnp.float32, -bound, bound)
    fc_bias = jax.random.uniform(k3, (output_dim,), jnp.float32, -bound, bound)
    return emb_table, fc_weight, fc_bias


def reference(text, emb_table, fc_weight, fc_bias, transport_dtype=jnp.float32):
    # Plain-JAX mirror of the PyTorch forward (embed -> permute -> mean over seq -> fc).
    emb = jnp.take(emb_table.astype(transport_dtype), text, axis=0).astype(jnp.float32)
    pooled = jnp.mean(emb, axis=0)                  # (B, E)
    return pooled @ fc_weight.T + fc_bias


def _check(out, ref, atol, rtol=1e-4):
    err = float(jnp.max(jnp.abs(out - ref)))
    assert jnp.allclose(out, ref, atol=atol, rtol=rtol), err


if __name__ == "__main__":
    key = jax.random.PRNGKey(0)

    # --- Config 1: module's natural small shapes (E=32 < 128 -> lane-dense-batch path)
    vocab_size, embedding_dim, output_dim, pad_idx = 50, 32, 8, 0
    seq_len, batch = 12, 20
    kp, kt, key = jax.random.split(key, 3)
    emb_table, fc_weight, fc_bias = init_params(
        kp, vocab_size, embedding_dim, output_dim, pad_idx)
    text = jax.random.randint(kt, (seq_len, batch), 0, vocab_size, jnp.int32)
    text = text.at[-1, :].set(pad_idx)              # include some pad tokens

    # Exact f32 semantics (matches the PyTorch module).
    out_f32 = jax.block_until_ready(
        fasttext_forward(text, emb_table, fc_weight, fc_bias,
                         transport_dtype=jnp.float32))
    assert out_f32.shape == (batch, output_dim)
    _check(out_f32, reference(text, emb_table, fc_weight, fc_bias), atol=1e-4)

    # Default bf16 transport (f32 accumulation inside the kernel).
    out_bf16 = jax.block_until_ready(
        fasttext_forward(text, emb_table, fc_weight, fc_bias))
    _check(out_bf16, reference(text, emb_table, fc_weight, fc_bias, jnp.bfloat16), atol=1e-4)
    _check(out_bf16, reference(text, emb_table, fc_weight, fc_bias), atol=5e-2)

    # --- Config 2: E=128 exercises the wide (batch-on-sublanes) path + 2-tile grid
    vocab_size, embedding_dim, output_dim = 64, 128, 10
    seq_len, batch = 10, 24
    kp, kt = jax.random.split(key)
    emb_table, fc_weight, fc_bias = init_params(
        kp, vocab_size, embedding_dim, output_dim, pad_idx)
    text = jax.random.randint(kt, (seq_len, batch), 0, vocab_size, jnp.int32)
    out2 = jax.block_until_ready(
        fasttext_forward(text, emb_table, fc_weight, fc_bias))
    assert out2.shape == (batch, output_dim)
    _check(out2, reference(text, emb_table, fc_weight, fc_bias, jnp.bfloat16), atol=1e-4)

    print("KERNEL_OK")
</pallas_src>

<mosaic_0001>
module attributes {stable_mosaic.version = 11 : i64} {
  func.func @_kernel_narrow(%arg0: i32, %arg1: memref<12x32x128xf32, #tpu.memory_space<vmem>>, %arg2: memref<128x32xf32, #tpu.memory_space<vmem>>, %arg3: memref<128x1xf32, #tpu.memory_space<vmem>>, %arg4: memref<128x128xf32, #tpu.memory_space<vmem>>) attributes {dimension_semantics = [#tpu.dimension_semantics<parallel>], iteration_bounds = array<i64: 1>, scalar_prefetch = 0 : i64, scratch_operands = 0 : i64, tpu.core_type = #tpu.core_type<tc>, window_params = [{transform_indices = @transform_0, window_bounds = array<i64: 12, 32, 128>}, {pipeline_mode = #tpu.pipeline_mode<synchronous>, transform_indices = @transform_1, window_bounds = array<i64: 128, 32>}, {pipeline_mode = #tpu.pipeline_mode<synchronous>, transform_indices = @transform_2, window_bounds = array<i64: 128, 1>}, {transform_indices = @transform_3, window_bounds = array<i64: 128, 128>}]} {
    %cst = arith.constant 0.000000e+00 : f32
    %0 = vector.broadcast %cst : f32 to vector<32x128xf32>
    %c0_i32 = arith.constant 0 : i32
    %1 = arith.index_cast %c0_i32 : i32 to index
    %c0 = arith.constant 0 : index
    %c0_0 = arith.constant 0 : index
    %2 = vector.load %arg1[%1, %c0, %c0_0] : memref<12x32x128xf32, #tpu.memory_space<vmem>>, vector<1x32x128xf32>
    %3 = vector.shape_cast %2 : vector<1x32x128xf32> to vector<32x128xf32>
    %4 = arith.addf %0, %3 : vector<32x128xf32>
    %c1_i32 = arith.constant 1 : i32
    %5 = arith.index_cast %c1_i32 : i32 to index
    %c0_1 = arith.constant 0 : index
    %c0_2 = arith.constant 0 : index
    %6 = vector.load %arg1[%5, %c0_1, %c0_2] : memref<12x32x128xf32, #tpu.memory_space<vmem>>, vector<1x32x128xf32>
    %7 = vector.shape_cast %6 : vector<1x32x128xf32> to vector<32x128xf32>
    %8 = arith.addf %4, %7 : vector<32x128xf32>
    %c2_i32 = arith.constant 2 : i32
    %9 = arith.index_cast %c2_i32 : i32 to index
    %c0_3 = arith.constant 0 : index
    %c0_4 = arith.constant 0 : index
    %10 = vector.load %arg1[%9, %c0_3, %c0_4] : memref<12x32x128xf32, #tpu.memory_space<vmem>>, vector<1x32x128xf32>
    %11 = vector.shape_cast %10 : vector<1x32x128xf32> to vector<32x128xf32>
    %12 = arith.addf %8, %11 : vector<32x128xf32>
    %c3_i32 = arith.constant 3 : i32
    %13 = arith.index_cast %c3_i32 : i32 to index
    %c0_5 = arith.constant 0 : index
    %c0_6 = arith.constant 0 : index
    %14 = vector.load %arg1[%13, %c0_5, %c0_6] : memref<12x32x128xf32, #tpu.memory_space<vmem>>, vector<1x32x128xf32>
    %15 = vector.shape_cast %14 : vector<1x32x128xf32> to vector<32x128xf32>
    %16 = arith.addf %12, %15 : vector<32x128xf32>
    %c4_i32 = arith.constant 4 : i32
    %17 = arith.index_cast %c4_i32 : i32 to index
    %c0_7 = arith.constant 0 : index
    %c0_8 = arith.constant 0 : index
    %18 = vector.load %arg1[%17, %c0_7, %c0_8] : memref<12x32x128xf32, #tpu.memory_space<vmem>>, vector<1x32x128xf32>
    %19 = vector.shape_cast %18 : vector<1x32x128xf32> to vector<32x128xf32>
    %20 = arith.addf %16, %19 : vector<32x128xf32>
    %c5_i32 = arith.constant 5 : i32
    %21 = arith.index_cast %c5_i32 : i32 to index
    %c0_9 = arith.constant 0 : index
    %c0_10 = arith.constant 0 : index
    %22 = vector.load %arg1[%21, %c0_9, %c0_10] : memref<12x32x128xf32, #tpu.memory_space<vmem>>, vector<1x32x128xf32>
    %23 = vector.shape_cast %22 : vector<1x32x128xf32> to vector<32x128xf32>
    %24 = arith.addf %20, %23 : vector<32x128xf32>
    %c6_i32 = arith.constant 6 : i32
    %25 = arith.index_cast %c6_i32 : i32 to index
    %c0_11 = arith.constant 0 : index
    %c0_12 = arith.constant 0 : index
    %26 = vector.load %arg1[%25, %c0_11, %c0_12] : memref<12x32x128xf32, #tpu.memory_space<vmem>>, vector<1x32x128xf32>
    %27 = vector.shape_cast %26 : vector<1x32x128xf32> to vector<32x128xf32>
    %28 = arith.addf %24, %27 : vector<32x128xf32>
    %c7_i32 = arith.constant 7 : i32
    %29 = arith.index_cast %c7_i32 : i32 to index
    %c0_13 = arith.constant 0 : index
    %c0_14 = arith.constant 0 : index
    %30 = vector.load %arg1[%29, %c0_13, %c0_14] : memref<12x32x128xf32, #tpu.memory_space<vmem>>, vector<1x32x128xf32>
    %31 = vector.shape_cast %30 : vector<1x32x128xf32> to vector<32x128xf32>
    %32 = arith.addf %28, %31 : vector<32x128xf32>
    %c8_i32 = arith.constant 8 : i32
    %33 = arith.index_cast %c8_i32 : i32 to index
    %c0_15 = arith.constant 0 : index
    %c0_16 = arith.constant 0 : index
    %34 = vector.load %arg1[%33, %c0_15, %c0_16] : memref<12x32x128xf32, #tpu.memory_space<vmem>>, vector<1x32x128xf32>
    %35 = vector.shape_cast %34 : vector<1x32x128xf32> to vector<32x128xf32>
    %36 = arith.addf %32, %35 : vector<32x128xf32>
    %c9_i32 = arith.constant 9 : i32
    %37 = arith.index_cast %c9_i32 : i32 to index
    %c0_17 = arith.constant 0 : index
    %c0_18 = arith.constant 0 : index
    %38 = vector.load %arg1[%37, %c0_17, %c0_18] : memref<12x32x128xf32, #tpu.memory_space<vmem>>, vector<1x32x128xf32>
    %39 = vector.shape_cast %38 : vector<1x32x128xf32> to vector<32x128xf32>
    %40 = arith.addf %36, %39 : vector<32x128xf32>
    %c10_i32 = arith.constant 10 : i32
    %41 = arith.index_cast %c10_i32 : i32 to index
    %c0_19 = arith.constant 0 : index
    %c0_20 = arith.constant 0 : index
    %42 = vector.load %arg1[%41, %c0_19, %c0_20] : memref<12x32x128xf32, #tpu.memory_space<vmem>>, vector<1x32x128xf32>
    %43 = vector.shape_cast %42 : vector<1x32x128xf32> to vector<32x128xf32>
    %44 = arith.addf %40, %43 : vector<32x128xf32>
    %c11_i32 = arith.constant 11 : i32
    %45 = arith.index_cast %c11_i32 : i32 to index
    %c0_21 = arith.constant 0 : index
    %c0_22 = arith.constant 0 : index
    %46 = vector.load %arg1[%45, %c0_21, %c0_22] : memref<12x32x128xf32, #tpu.memory_space<vmem>>, vector<1x32x128xf32>
    %47 = vector.shape_cast %46 : vector<1x32x128xf32> to vector<32x128xf32>
    %48 = arith.addf %44, %47 : vector<32x128xf32>
    %c12_i32 = arith.constant 12 : i32
    %c0_23 = arith.constant 0 : index
    %c0_24 = arith.constant 0 : index
    %49 = vector.load %arg2[%c0_23, %c0_24] : memref<128x32xf32, #tpu.memory_space<vmem>>, vector<128x32xf32>
    %cst_25 = arith.constant dense<0.000000e+00> : vector<128x128xf32>
    %50 = tpu.matmul %49, %48, %cst_25 {dimension_numbers = #tpu.dot_dimension_numbers<[1], [0], [0], [1], [0, 0, 1, 1], [], []>} : vector<128x32xf32>, vector<32x128xf32>, vector<128x128xf32> -> vector<128x128xf32>
    %c0_26 = arith.constant 0 : index
    %c0_27 = arith.constant 0 : index
    %51 = vector.load %arg3[%c0_26, %c0_27] : memref<128x1xf32, #tpu.memory_space<vmem>>, vector<128x1xf32>
    %52 = vector.broadcast %51 : vector<128x1xf32> to vector<128x128xf32>
    %53 = arith.addf %50, %52 : vector<128x128xf32>
    %c0_28 = arith.constant 0 : index
    %c0_29 = arith.constant 0 : index
    %54 = vector.load %arg4[%c0_28, %c0_29] : memref<128x128xf32, #tpu.memory_space<vmem>>, vector<128x128xf32>
    tpu.vector_store %arg4[%c0_28, %c0_29], %53 {strides = array<i32>} : memref<128x128xf32, #tpu.memory_space<vmem>>, vector<128x128xf32>,
    return
  }
  func.func @transform_0(%arg0: i32) -> (i32, i32, i32) {
    %c0_i32 = arith.constant 0 : i32
    %c0_i32_0 = arith.constant 0 : i32
    %c0_i32_1 = arith.constant 0 : i32
    return %c0_i32, %c0_i32_0, %arg0 : i32, i32, i32
  }
  func.func @transform_1(%arg0: i32) -> (i32, i32) {
    %c0_i32 = arith.constant 0 : i32
    %c0_i32_0 = arith.constant 0 : i32
    %c0_i32_1 = arith.constant 0 : i32
    return %c0_i32, %c0_i32_0 : i32, i32
  }
  func.func @transform_2(%arg0: i32) -> (i32, i32) {
    %c0_i32 = arith.constant 0 : i32
    %c0_i32_0 = arith.constant 0 : i32
    %c0_i32_1 = arith.constant 0 : i32
    return %c0_i32, %c0_i32_0 : i32, i32
  }
  func.func @transform_3(%arg0: i32) -> (i32, i32) {
    %c0_i32 = arith.constant 0 : i32
    %c0_i32_0 = arith.constant 0 : i32
    return %c0_i32, %arg0 : i32, i32
  }
}

</mosaic_0001>

<llo_original>
// kernel: tpu_custom_call.1
$region0: #{tpu_custom_call.1}
  #allocation0 [shape = 'u32[]', space=smem, size = 0x4, offset = 0x4, fixed_abs, tag = 'smem constant byte address 0x4 - core index']
  #allocation1 [shape = 'u32[72,128]{1,0:T(1,128)}', space=vmem, size = 0x9000, scoped, tag = 'internal scratch']
  %s0 = inlined_call_operand.hbm [shape: f32[12,32,128], index: 0, kind: input, shape index: {}]
  %s1 = inlined_call_operand.vmem [shape: f32[128,32], index: 1, kind: input, shape index: {}]
  %s2 = inlined_call_operand.vmem [shape: f32[128,1], index: 2, kind: input, shape index: {}]
  %s3 = inlined_call_operand.hbm [shape: f32[128,128], index: 3, kind: output, shape index: {}]
  %s4 = sld [smem:[#allocation0]]
  $region26: #{tpu_custom_call.1} parent=0
    _
  %s6 = ssub.s32 1, %s4
  %s7 = scalar_select 0, %s6, %s4
  $region1: #{tpu_custom_call.1} parent=0
    #allocation2 [shape = 'u8[196608]{0}', space=vmem, size = 0x30000, scoped, tag = 'input window, operand 0, single buffered']
    #allocation3 [shape = 's32[1]{0}', space=sflag, size = 0x4, scoped, tag = 'scoped memory for tpu_custom_call.1']
    #allocation4 [shape = 's32[1]{0}', space=sflag, size = 0x4, scoped, tag = 'scoped memory for tpu_custom_call.1']
    #allocation5 [shape = 'u8[65536]{0}', space=vmem, size = 0x10000, scoped, tag = 'output window, operand 0, single buffered']
    %8 = vsyncpa [#allocation3], 0
    %9 = vsyncpa [#allocation4], 0
    // Predicated region
    $region2: #{tpu_custom_call.1} parent=1 // pred_check
      _
    $region3: #{tpu_custom_call.1} parent=1 // pred_check_branch
      %11 = sbr.rel (0) target = $region5
    $region4: #{tpu_custom_call.1} parent=1 // pred_region
      %13 = vsyncadd [#allocation3], 0
      %s14 = sshll.u32 %s0, 4
      %s15 = int_to_ptr.hbm [resolvable:$true] %s14
      %s16 = sshll.u32 [#allocation2], 4
      %s17 = int_to_ptr.vmem [resolvable:$true] %s16
      %22 = dma.hbm_to_vmem [thread:$0]  %s15, 6144, %s17, [#allocation3], 128, 128, 8
    $region5: #{tpu_custom_call.1} parent=1 // pred_fallthru
      _
    // Predicated region
    $region6: #{tpu_custom_call.1} parent=1 // pred_check
      _
    $region7: #{tpu_custom_call.1} parent=1 // pred_check_branch
      %24 = sbr.rel (0) target = $region9
    $region8: #{tpu_custom_call.1} parent=1 // pred_region
      _
    $region9: #{tpu_custom_call.1} parent=1 // pred_fallthru
      _
    // Predicated region
    $region10: #{tpu_custom_call.1} parent=1 // pred_check
      _
    $region11: #{tpu_custom_call.1} parent=1 // pred_check_branch
      %26 = sbr.rel (0) target = $region13
    $region12: #{tpu_custom_call.1} parent=1 // pred_region
      _
    $region13: #{tpu_custom_call.1} parent=1 // pred_fallthru
      _
    // Predicated region
    $region14: #{tpu_custom_call.1} parent=1 // pred_check
      _
    $region15: #{tpu_custom_call.1} parent=1 // pred_check_branch
      %28 = sbr.rel (0) target = $region17
    $region16: #{tpu_custom_call.1} parent=1 // pred_region
      %30 = dma.done [#allocation3], 6144
    $region17: #{tpu_custom_call.1} parent=1 // pred_fallthru
      _
    %v31 = vld [vmem:[#allocation2] sm:$0xff]
    %v32 = vld [vmem:[#allocation2 + $0x8] sm:$0xff]
    %v33 = vld [vmem:[#allocation2 + $0x10] sm:$0xff]
    %v34 = vld [vmem:[#allocation2 + $0x18] sm:$0xff]
    %v35 = vadd.f32 %v31, 0.0
    %v36 = vadd.f32 %v32, 0.0
    %v37 = vadd.f32 %v33, 0.0
    %v38 = vadd.f32 %v34, 0.0
    %s39 = scalar_lea.vmem [#allocation2], 32
    %v40 = vld [vmem:[%s39] sm:$0xff]
    %v41 = vld [vmem:[%s39 + $0x8] sm:$0xff]
    %v42 = vld [vmem:[%s39 + $0x10] sm:$0xff]
    %v43 = vld [vmem:[%s39 + $0x18] sm:$0xff]
    %v44 = vadd.f32 %v35, %v40
    %v45 = vadd.f32 %v36, %v41
    %v46 = vadd.f32 %v37, %v42
    %v47 = vadd.f32 %v38, %v43
    %s48 = scalar_lea.vmem [#allocation2], 64
    %v49 = vld [vmem:[%s48] sm:$0xff]
    %v50 = vld [vmem:[%s48 + $0x8] sm:$0xff]
    %v51 = vld [vmem:[%s48 + $0x10] sm:$0xff]
    %v52 = vld [vmem:[%s48 + $0x18] sm:$0xff]
    %v53 = vadd.f32 %v44, %v49
    %v54 = vadd.f32 %v45, %v50
    %v55 = vadd.f32 %v46, %v51
    %v56 = vadd.f32 %v47, %v52
    %s57 = scalar_lea.vmem [#allocation2], 96
    %v58 = vld [vmem:[%s57] sm:$0xff]
    %v59 = vld [vmem:[%s57 + $0x8] sm:$0xff]
    %v60 = vld [vmem:[%s57 + $0x10] sm:$0xff]
    %v61 = vld [vmem:[%s57 + $0x18] sm:$0xff]
    %v62 = vadd.f32 %v53, %v58
    %v63 = vadd.f32 %v54, %v59
    %v64 = vadd.f32 %v55, %v60
    %v65 = vadd.f32 %v56, %v61
    %s66 = scalar_lea.vmem [#allocation2], 128
    %v67 = vld [vmem:[%s66] sm:$0xff]
    %v68 = vld [vmem:[%s66 + $0x8] sm:$0xff]
    %v69 = vld [vmem:[%s66 + $0x10] sm:$0xff]
    %v70 = vld [vmem:[%s66 + $0x18] sm:$0xff]
    %v71 = vadd.f32 %v62, %v67
    %v72 = vadd.f32 %v63, %v68
    %v73 = vadd.f32 %v64, %v69
    %v74 = vadd.f32 %v65, %v70
    %s75 = scalar_lea.vmem [#allocation2], 160
    %v76 = vld [vmem:[%s75] sm:$0xff]
    %v77 = vld [vmem:[%s75 + $0x8] sm:$0xff]
    %v78 = vld [vmem:[%s75 + $0x10] sm:$0xff]
    %v79 = vld [vmem:[%s75 + $0x18] sm:$0xff]
    %v80 = vadd.f32 %v71, %v76
    %v81 = vadd.f32 %v72, %v77
    %v82 = vadd.f32 %v73, %v78
    %v83 = vadd.f32 %v74, %v79
    %s84 = scalar_lea.vmem [#allocation2], 192
    %v85 = vld [vmem:[%s84] sm:$0xff]
    %v86 = vld [vmem:[%s84 + $0x8] sm:$0xff]
    %v87 = vld [vmem:[%s84 + $0x10] sm:$0xff]
    %v88 = vld [vmem:[%s84 + $0x18] sm:$0xff]
    %v89 = vadd.f32 %v80, %v85
    %v90 = vadd.f32 %v81, %v86
    %v91 = vadd.f32 %v82, %v87
    %v92 = vadd.f32 %v83, %v88
    %s93 = scalar_lea.vmem [#allocation2], 224
    %v94 = vld [vmem:[%s93] sm:$0xff]
    %v95 = vld [vmem:[%s93 + $0x8] sm:$0xff]
    %v96 = vld [vmem:[%s93 + $0x10] sm:$0xff]
    %v97 = vld [vmem:[%s93 + $0x18] sm:$0xff]
    %v98 = vadd.f32 %v89, %v94
    %v99 = vadd.f32 %v90, %v95
    %v100 = vadd.f32 %v91, %v96
    %v101 = vadd.f32 %v92, %v97
    %s102 = scalar_lea.vmem [#allocation2], 256
    %v103 = vld [vmem:[%s102] sm:$0xff]
    %v104 = vld [vmem:[%s102 + $0x8] sm:$0xff]
    %v105 = vld [vmem:[%s102 + $0x10] sm:$0xff]
    %v106 = vld [vmem:[%s102 + $0x18] sm:$0xff]
    %v107 = vadd.f32 %v98, %v103
    %v108 = vadd.f32 %v99, %v104
    %v109 = vadd.f32 %v100, %v105
    %v110 = vadd.f32 %v101, %v106
    %s111 = scalar_lea.vmem [#allocation2], 288
    %v112 = vld [vmem:[%s111] sm:$0xff]
    %v113 = vld [vmem:[%s111 + $0x8] sm:$0xff]
    %v114 = vld [vmem:[%s111 + $0x10] sm:$0xff]
    %v115 = vld [vmem:[%s111 + $0x18] sm:$0xff]
    %v116 = vadd.f32 %v107, %v112
    %v117 = vadd.f32 %v108, %v113
    %v118 = vadd.f32 %v109, %v114
    %v119 = vadd.f32 %v110, %v115
    %s120 = scalar_lea.vmem [#allocation2], 320
    %v121 = vld [vmem:[%s120] sm:$0xff]
    %v122 = vld [vmem:[%s120 + $0x8] sm:$0xff]
    %v123 = vld [vmem:[%s120 + $0x10] sm:$0xff]
    %v124 = vld [vmem:[%s120 + $0x18] sm:$0xff]
    %v125 = vadd.f32 %v116, %v121
    %v126 = vadd.f32 %v117, %v122
    %v127 = vadd.f32 %v118, %v123
    %v128 = vadd.f32 %v119, %v124
    %s129 = scalar_lea.vmem [#allocation2], 352
    %v130 = vld [vmem:[%s129] sm:$0xff]
    %v131 = vld [vmem:[%s129 + $0x8] sm:$0xff]
    %v132 = vld [vmem:[%s129 + $0x10] sm:$0xff]
    %v133 = vld [vmem:[%s129 + $0x18] sm:$0xff]
    %v134 = vadd.f32 %v125, %v130
    %v135 = vadd.f32 %v126, %v131
    %v136 = vadd.f32 %v127, %v132
    %v137 = vadd.f32 %v128, %v133
    %v138 = vld [vmem:[%s1] sm:$0xff]
    %v139 = vld [vmem:[%s1 + $0x8] sm:$0xff]
    %v140 = vld [vmem:[%s1 + $0x10] sm:$0xff]
    %v141 = vld [vmem:[%s1 + $0x18] sm:$0xff]
    %v142 = vld [vmem:[%s1 + $0x20] sm:$0xff]
    %v143 = vld [vmem:[%s1 + $0x28] sm:$0xff]
    %v144 = vld [vmem:[%s1 + $0x30] sm:$0xff]
    %v145 = vld [vmem:[%s1 + $0x38] sm:$0xff]
    %v146 = vld [vmem:[%s1 + $0x40] sm:$0xff]
    %v147 = vld [vmem:[%s1 + $0x48] sm:$0xff]
    %v148 = vld [vmem:[%s1 + $0x50] sm:$0xff]
    %v149 = vld [vmem:[%s1 + $0x58] sm:$0xff]
    %v150 = vld [vmem:[%s1 + $0x60] sm:$0xff]
    %v151 = vld [vmem:[%s1 + $0x68] sm:$0xff]
    %v152 = vld [vmem:[%s1 + $0x70] sm:$0xff]
    %v153 = vld [vmem:[%s1 + $0x78] sm:$0xff]
    %v154 = vld [vmem:[%s2] sm:$0xff]
    %v155 = vld [vmem:[%s2 + $0x8] sm:$0xff]
    %v156 = vld [vmem:[%s2 + $0x10] sm:$0xff]
    %v157 = vld [vmem:[%s2 + $0x18] sm:$0xff]
    %v158 = vld [vmem:[%s2 + $0x20] sm:$0xff]
    %v159 = vld [vmem:[%s2 + $0x28] sm:$0xff]
    %v160 = vld [vmem:[%s2 + $0x30] sm:$0xff]
    %v161 = vld [vmem:[%s2 + $0x38] sm:$0xff]
    %v162 = vld [vmem:[%s2 + $0x40] sm:$0xff]
    %v163 = vld [vmem:[%s2 + $0x48] sm:$0xff]
    %v164 = vld [vmem:[%s2 + $0x50] sm:$0xff]
    %v165 = vld [vmem:[%s2 + $0x58] sm:$0xff]
    %v166 = vld [vmem:[%s2 + $0x60] sm:$0xff]
    %v167 = vld [vmem:[%s2 + $0x68] sm:$0xff]
    %v168 = vld [vmem:[%s2 + $0x70] sm:$0xff]
    %v169 = vld [vmem:[%s2 + $0x78] sm:$0xff]
    %171 = vset.pattern.permute.xlu0 0
    %172 = vperm.xlu0 %171, %v154
    %v173 = vpop.permute.xlu0 %172
    %176 = vset.pattern.permute.xlu0 0
    %177 = vperm.xlu0 %176, %v155
    %v178 = vpop.permute.xlu0 %177
    %181 = vset.pattern.permute.xlu0 0
    %182 = vperm.xlu0 %181, %v156
    %v183 = vpop.permute.xlu0 %182
    %186 = vset.pattern.permute.xlu0 0
    %187 = vperm.xlu0 %186, %v157
    %v188 = vpop.permute.xlu0 %187
    %191 = vset.pattern.permute.xlu0 0
    %192 = vperm.xlu0 %191, %v158
    %v193 = vpop.permute.xlu0 %192
    %196 = vset.pattern.permute.xlu0 0
    %197 = vperm.xlu0 %196, %v159
    %v198 = vpop.permute.xlu0 %197
    %201 = vset.pattern.permute.xlu0 0
    %202 = vperm.xlu0 %201, %v160
    %v203 = vpop.permute.xlu0 %202
    %206 = vset.pattern.permute.xlu0 0
    %207 = vperm.xlu0 %206, %v161
    %v208 = vpop.permute.xlu0 %207
    %211 = vset.pattern.permute.xlu0 0
    %212 = vperm.xlu0 %211, %v162
    %v213 = vpop.permute.xlu0 %212
    %216 = vset.pattern.permute.xlu0 0
    %217 = vperm.xlu0 %216, %v163
    %v218 = vpop.permute.xlu0 %217
    %221 = vset.pattern.permute.xlu0 0
    %222 = vperm.xlu0 %221, %v164
    %v223 = vpop.permute.xlu0 %222
    %226 = vset.pattern.permute.xlu0 0
    %227 = vperm.xlu0 %226, %v165
    %v228 = vpop.permute.xlu0 %227
    %231 = vset.pattern.permute.xlu0 0
    %232 = vperm.xlu0 %231, %v166
    %v233 = vpop.permute.xlu0 %232
    %236 = vset.pattern.permute.xlu0 0
    %237 = vperm.xlu0 %236, %v167
    %v238 = vpop.permute.xlu0 %237
    %241 = vset.pattern.permute.xlu0 0
    %242 = vperm.xlu0 %241, %v168
    %v243 = vpop.permute.xlu0 %242
    %246 = vset.pattern.permute.xlu0 0
    %247 = vperm.xlu0 %246, %v169
    %v248 = vpop.permute.xlu0 %247
    %vm250 = vcmask 261120
    %v252 = vsel %vm250, %v138, 0
    %v255 = vsel %vm250, %v139, 0
    %v258 = vsel %vm250, %v140, 0
    %v261 = vsel %vm250, %v141, 0
    %v264 = vsel %vm250, %v142, 0
    %v267 = vsel %vm250, %v143, 0
    %v270 = vsel %vm250, %v144, 0
    %v273 = vsel %vm250, %v145, 0
    %v276 = vsel %vm250, %v146, 0
    %v279 = vsel %vm250, %v147, 0
    %v282 = vsel %vm250, %v148, 0
    %v285 = vsel %vm250, %v149, 0
    %v288 = vsel %vm250, %v150, 0
    %v291 = vsel %vm250, %v151, 0
    %v294 = vsel %vm250, %v152, 0
    %v297 = vsel %vm250, %v153, 0
    %299 = vmatpush.msra.mxu0 0.0
    %300 = vmatpush.msra.mxu0 0.0
    %301 = vmatpush.msra.mxu0 0.0
    %302 = vmatpush.msra.mxu0 0.0
    %303 = vmatpush.msra.mxu0 0.0
    %304 = vmatpush.msra.mxu0 0.0
    %305 = vmatpush.msra.mxu0 0.0
    %306 = vmatpush.msra.mxu0 0.0
    %307 = vmatpush.msra.mxu0 0.0
    %308 = vmatpush.msra.mxu0 0.0
    %309 = vmatpush.msra.mxu0 0.0
    %310 = vmatpush.msra.mxu0 0.0
    %311 = vmatpush.msra.mxu0 %v137
    %312 = vmatpush.msra.mxu0 %v136
    %313 = vmatpush.msra.mxu0 %v135
    %314 = vmatpush.msra.mxu0 %v134
    %315 = vmatmul.f32.gmra.mxu0 %v252
    %v316 = vpop.f32.mrf.mxu0
    %v317 = vadd.f32 %v173, %v316
    %318 = vmatmul.f32.gmra.mxu0 %v255
    %v319 = vpop.f32.mrf.mxu0
    %v320 = vadd.f32 %v178, %v319
    %321 = vmatmul.f32.gmra.mxu0 %v258
    %v322 = vpop.f32.mrf.mxu0
    %v323 = vadd.f32 %v183, %v322
    %324 = vmatmul.f32.gmra.mxu0 %v261
    %v325 = vpop.f32.mrf.mxu0
    %v326 = vadd.f32 %v188, %v325
    %327 = vmatmul.f32.gmra.mxu0 %v264
    %v328 = vpop.f32.mrf.mxu0
    %v329 = vadd.f32 %v193, %v328
    %330 = vmatmul.f32.gmra.mxu0 %v267
    %v331 = vpop.f32.mrf.mxu0
    %v332 = vadd.f32 %v198, %v331
    %333 = vmatmul.f32.gmra.mxu0 %v270
    %v334 = vpop.f32.mrf.mxu0
    %v335 = vadd.f32 %v203, %v334
    %336 = vmatmul.f32.gmra.mxu0 %v273
    %v337 = vpop.f32.mrf.mxu0
    %v338 = vadd.f32 %v208, %v337
    %339 = vmatmul.f32.gmra.mxu0 %v276
    %v340 = vpop.f32.mrf.mxu0
    %v341 = vadd.f32 %v213, %v340
    %342 = vmatmul.f32.gmra.mxu0 %v279
    %v343 = vpop.f32.mrf.mxu0
    %v344 = vadd.f32 %v218, %v343
    %345 = vmatmul.f32.gmra.mxu0 %v282
    %v346 = vpop.f32.mrf.mxu0
    %v347 = vadd.f32 %v223, %v346
    %348 = vmatmul.f32.gmra.mxu0 %v285
    %v349 = vpop.f32.mrf.mxu0
    %v350 = vadd.f32 %v228, %v349
    %351 = vmatmul.f32.gmra.mxu0 %v288
    %v352 = vpop.f32.mrf.mxu0
    %v353 = vadd.f32 %v233, %v352
    %354 = vmatmul.f32.gmra.mxu0 %v291
    %v355 = vpop.f32.mrf.mxu0
    %v356 = vadd.f32 %v238, %v355
    %357 = vmatmul.f32.gmra.mxu0 %v294
    %v358 = vpop.f32.mrf.mxu0
    %v359 = vadd.f32 %v243, %v358
    %360 = vmatmul.f32.gmra.mxu0 %v297
    %v361 = vpop.f32.mrf.mxu0
    %v362 = vadd.f32 %v248, %v361
    %363 = vdwg.mxu0
    %364 = vst [vmem:[#allocation5] sm:$0xff] %v317
    %365 = vst [vmem:[#allocation5 + $0x8] sm:$0xff] %v320
    %366 = vst [vmem:[#allocation5 + $0x10] sm:$0xff] %v323
    %367 = vst [vmem:[#allocation5 + $0x18] sm:$0xff] %v326
    %368 = vst [vmem:[#allocation5 + $0x20] sm:$0xff] %v329
    %369 = vst [vmem:[#allocation5 + $0x28] sm:$0xff] %v332
    %370 = vst [vmem:[#allocation5 + $0x30] sm:$0xff] %v335
    %371 = vst [vmem:[#allocation5 + $0x38] sm:$0xff] %v338
    %372 = vst [vmem:[#allocation5 + $0x40] sm:$0xff] %v341
    %373 = vst [vmem:[#allocation5 + $0x48] sm:$0xff] %v344
    %374 = vst [vmem:[#allocation5 + $0x50] sm:$0xff] %v347
    %375 = vst [vmem:[#allocation5 + $0x58] sm:$0xff] %v350
    %376 = vst [vmem:[#allocation5 + $0x60] sm:$0xff] %v353
    %377 = vst [vmem:[#allocation5 + $0x68] sm:$0xff] %v356
    %378 = vst [vmem:[#allocation5 + $0x70] sm:$0xff] %v359
    %379 = vst [vmem:[#allocation5 + $0x78] sm:$0xff] %v362
    // Predicated region
    $region18: #{tpu_custom_call.1} parent=1 // pred_check
      _
    $region19: #{tpu_custom_call.1} parent=1 // pred_check_branch
      %381 = sbr.rel (0) target = $region21
    $region20: #{tpu_custom_call.1} parent=1 // pred_region
      %383 = vsyncadd [#allocation4], 0
      %s384 = sshll.u32 [#allocation5], 4
      %s385 = int_to_ptr.vmem [resolvable:$true] %s384
      %s386 = sshll.u32 %s3, 4
      %s387 = int_to_ptr.hbm [resolvable:$true] %s386
      %392 = dma.vmem_to_hbm [thread:$0]  %s385, 2048, %s387, [#allocation4], 128, 128, 8
    $region21: #{tpu_custom_call.1} parent=1 // pred_fallthru
      _
    // Predicated region
    $region22: #{tpu_custom_call.1} parent=1 // pred_check
      _
    $region23: #{tpu_custom_call.1} parent=1 // pred_check_branch
      %394 = sbr.rel (0) target = $region25
    $region24: #{tpu_custom_call.1} parent=1 // pred_region
      %396 = dma.done [#allocation4], 2048
    $region25: #{tpu_custom_call.1} parent=1 // pred_fallthru
      _
    %397 = vsyncpa [#allocation3], 1
    %398 = vsyncpa [#allocation4], 1

</llo_original>
